<compile_context>
chip_gen: v6e
topology: v6e:2x2x1
jax: 0.10.0
libtpu: 0.0.40
codegen_flags: <defaults>
</compile_context>

<pallas_src>
import functools

import jax
import jax.numpy as jnp
from jax.experimental import pallas as pl
from jax.experimental.pallas import tpu as pltpu

_LANE = 128     # TPU lane width
_SUBLANE = 8    # TPU sublane count (f32)


def _round_up(x, m):
    return ((x + m - 1) // m) * m


def _encoder_kernel(h, lhs_ref, w_ref, b_ref, out_ref, cls_scratch):
    # lhs_ref     : [B, S, H]       full (simulated) BERT last_hidden_state
    # w_ref       : [H_pad, E_pad]  fc.weight pre-transposed to [K, N], zero-padded
    # b_ref       : [8, E_pad]      fc.bias pre-broadcast over sublanes, zero-padded
    # out_ref     : [8, E_pad]      row 0 holds the real embedding
    # cls_scratch : [8, H_pad]      VMEM scratch for the padded CLS operand
    #
    # forward returns fc(last_hidden_state[:, 0, :])[0] == fc(last_hidden_state[0, 0, :]):
    # build the lane/sublane-padded CLS operand in VMEM (zero rows / zero lanes
    # contribute nothing to the contraction).
    cls_scratch[...] = jnp.zeros_like(cls_scratch)
    cls_scratch[0:1, :h] = lhs_ref[0, 0:1, :]

    y = jnp.dot(cls_scratch[...], w_ref[...], preferred_element_type=jnp.float32)
    out_ref[...] = (y + b_ref[...]).astype(out_ref.dtype)


def prepare_fc_params(fc_weight, fc_bias):
    """One-time layout prep for the fc layer (analogue of module __init__).

    * Transposes the PyTorch [E, H] weight to MXU-friendly [H_pad, E_pad]
      (plain [K, N] contraction — no per-call transpose path).
    * Zero-pads lanes to multiples of 128 so all loads / MXU feeds are unmasked.
    * Pre-broadcasts the bias over 8 sublanes.
    """
    E, H = fc_weight.shape
    E_pad, H_pad = _round_up(E, _LANE), _round_up(H, _LANE)
    w_t_pad = jnp.zeros((H_pad, E_pad), jnp.float32).at[:H, :E].set(fc_weight.T)
    b_pad = jnp.zeros((_SUBLANE, E_pad), jnp.float32).at[:, :E].set(
        jnp.broadcast_to(fc_bias.astype(jnp.float32), (_SUBLANE, E)))
    return w_t_pad, b_pad


@functools.partial(jax.jit, static_argnames=("embedding_size",))
def prod_feature_encoder_forward(last_hidden_state, w_t_pad, b_pad, *, embedding_size):
    """Pallas implementation of ProdFeatureEncoder.forward (post-BERT part).

    Args:
      last_hidden_state: [B, S, H] float32 — (simulated) BERT output.
      w_t_pad, b_pad: padded/pre-transposed fc params from prepare_fc_params.
      embedding_size: E, the un-padded output width.
    Returns:
      [E] float32 — embedding[0], exactly as the PyTorch forward returns.
    """
    H = last_hidden_state.shape[-1]
    H_pad, E_pad = w_t_pad.shape

    out = pl.pallas_call(
        functools.partial(_encoder_kernel, H),
        out_shape=jax.ShapeDtypeStruct((_SUBLANE, E_pad), jnp.float32),
        in_specs=[
            pl.BlockSpec(memory_space=pltpu.MemorySpace.VMEM),  # whole [B,S,H] (tiny)
            pl.BlockSpec(memory_space=pltpu.MemorySpace.VMEM),
            pl.BlockSpec(memory_space=pltpu.MemorySpace.VMEM),
        ],
        out_specs=pl.BlockSpec(memory_space=pltpu.MemorySpace.VMEM),
        scratch_shapes=[pltpu.VMEM((_SUBLANE, H_pad), jnp.float32)],
    )(last_hidden_state, w_t_pad, b_pad)

    # Matches forward()'s return shape [E]. If a downstream consumer can take
    # the lane-dense padded row, slice there instead to save this tiny fusion.
    return out[0, :embedding_size]


def _xavier_uniform(key, out_dim, in_dim):
    # Matches torch.nn.init.xavier_uniform_ bound: sqrt(6 / (fan_in + fan_out))
    bound = (6.0 / (in_dim + out_dim)) ** 0.5
    return jax.random.uniform(key, (out_dim, in_dim), jnp.float32, -bound, bound)


if __name__ == "__main__":
    # Small, deterministic config consistent with the module:
    #   bert_output_size (H) = 64, embedding_size (E) = 32, batch B = 2, seq S = 8
    B, S, H, E = 2, 8, 64, 32

    key = jax.random.PRNGKey(0)
    k_lhs, k_w, k_b = jax.random.split(key, 3)

    # Simulated BERT last_hidden_state (stand-in for the pretrained model output).
    last_hidden_state = jax.random.normal(k_lhs, (B, S, H), jnp.float32)

    # fc parameters: xavier_uniform_ weight, default-Linear-style uniform bias.
    fc_weight = _xavier_uniform(k_w, E, H)
    b_bound = 1.0 / (H ** 0.5)
    fc_bias = jax.random.uniform(k_b, (E,), jnp.float32, -b_bound, b_bound)

    # One-time parameter layout prep (module-init analogue), then forward.
    w_t_pad, b_pad = prepare_fc_params(fc_weight, fc_bias)
    emb = prod_feature_encoder_forward(last_hidden_state, w_t_pad, b_pad,
                                       embedding_size=E)
    emb = jax.block_until_ready(emb)

    # Reference check in plain JAX (same math as the PyTorch forward).
    ref = (last_hidden_state[:, 0, :] @ fc_weight.T + fc_bias)[0]
    assert emb.shape == (E,)
    assert jnp.allclose(emb, ref, atol=1e-5, rtol=1e-5)

    print("KERNEL_OK")
</pallas_src>

<mosaic_0001>
module attributes {stable_mosaic.version = 11 : i64} {
  func.func @_encoder_kernel(%arg0: memref<2x8x64xf32, #tpu.memory_space<vmem>>, %arg1: memref<128x128xf32, #tpu.memory_space<vmem>>, %arg2: memref<8x128xf32, #tpu.memory_space<vmem>>, %arg3: memref<8x128xf32, #tpu.memory_space<vmem>>, %arg4: memref<8x128xf32, #tpu.memory_space<vmem>>) attributes {dimension_semantics = [], scalar_prefetch = 0 : i64, scratch_operands = 1 : i64, tpu.core_type = #tpu.core_type<tc>} {
    %cst = arith.constant 0.000000e+00 : f32
    %0 = vector.broadcast %cst : f32 to vector<8x128xf32>
    %c0 = arith.constant 0 : index
    %c0_0 = arith.constant 0 : index
    %1 = vector.load %arg4[%c0, %c0_0] : memref<8x128xf32, #tpu.memory_space<vmem>>, vector<8x128xf32>
    tpu.vector_store %arg4[%c0, %c0_0], %0 {strides = array<i32>} : memref<8x128xf32, #tpu.memory_space<vmem>>, vector<8x128xf32>,
    %c0_1 = arith.constant 0 : index
    %c0_2 = arith.constant 0 : index
    %c0_3 = arith.constant 0 : index
    %2 = vector.load %arg0[%c0_1, %c0_2, %c0_3] : memref<2x8x64xf32, #tpu.memory_space<vmem>>, vector<1x1x64xf32>
    %3 = vector.shape_cast %2 : vector<1x1x64xf32> to vector<1x64xf32>
    %c0_4 = arith.constant 0 : index
    %c0_5 = arith.constant 0 : index
    %4 = vector.load %arg4[%c0_4, %c0_5] : memref<8x128xf32, #tpu.memory_space<vmem>>, vector<1x64xf32>
    tpu.vector_store %arg4[%c0_4, %c0_5], %3 {strides = array<i32>} : memref<8x128xf32, #tpu.memory_space<vmem>>, vector<1x64xf32>,
    %c0_6 = arith.constant 0 : index
    %c0_7 = arith.constant 0 : index
    %5 = vector.load %arg4[%c0_6, %c0_7] : memref<8x128xf32, #tpu.memory_space<vmem>>, vector<8x128xf32>
    %c0_8 = arith.constant 0 : index
    %c0_9 = arith.constant 0 : index
    %6 = vector.load %arg1[%c0_8, %c0_9] : memref<128x128xf32, #tpu.memory_space<vmem>>, vector<128x128xf32>
    %cst_10 = arith.constant dense<0.000000e+00> : vector<8x128xf32>
    %7 = tpu.matmul %5, %6, %cst_10 {dimension_numbers = #tpu.dot_dimension_numbers<[1], [0], [0], [1], [0, 0, 1, 1], [], []>} : vector<8x128xf32>, vector<128x128xf32>, vector<8x128xf32> -> vector<8x128xf32>
    %c0_11 = arith.constant 0 : index
    %c0_12 = arith.constant 0 : index
    %8 = vector.load %arg2[%c0_11, %c0_12] : memref<8x128xf32, #tpu.memory_space<vmem>>, vector<8x128xf32>
    %9 = arith.addf %7, %8 : vector<8x128xf32>
    %c0_13 = arith.constant 0 : index
    %c0_14 = arith.constant 0 : index
    %10 = vector.load %arg3[%c0_13, %c0_14] : memref<8x128xf32, #tpu.memory_space<vmem>>, vector<8x128xf32>
    tpu.vector_store %arg3[%c0_13, %c0_14], %9 {strides = array<i32>} : memref<8x128xf32, #tpu.memory_space<vmem>>, vector<8x128xf32>,
    return
  }
}

</mosaic_0001>

<llo_original>
// kernel: prod_feature_encoder_forward.1
$region0: #{prod_feature_encoder_forward.1}
  #allocation0 [shape = 'u32[]', space=smem, size = 0x4, offset = 0x4, fixed_abs, tag = 'smem constant byte address 0x4 - core index']
  #allocation1 [shape = 'u32[144,128]{1,0:T(1,128)}', space=vmem, size = 0x12000, scoped, tag = 'internal scratch']
  #allocation2 [shape = 'f32[8,128]{1,0:T(8,128)}', space=vmem, size = 0x1000, scoped, tag = 'scratch operand']
  %s0 = inlined_call_operand.hbm [shape: f32[2,8,64], index: 0, kind: input, shape index: {}]
  %s1 = inlined_call_operand.hbm [shape: f32[128,128], index: 1, kind: input, shape index: {}]
  %s2 = inlined_call_operand.hbm [shape: f32[8,128], index: 2, kind: input, shape index: {}]
  %s3 = inlined_call_operand.vmem [shape: f32[8,128], index: 3, kind: output, shape index: {}]
  %s4 = sld [smem:[#allocation0]]
  $region34: #{prod_feature_encoder_forward.1} parent=0
    _
  %s6 = ssub.s32 1, %s4
  %s7 = scalar_select 0, %s6, %s4
  $region1: #{prod_feature_encoder_forward.1} parent=0
    #allocation3 [shape = 'u8[8192]{0}', space=vmem, size = 0x2000, scoped, tag = 'input window, operand 0, single buffered']
    #allocation4 [shape = 's32[1]{0}', space=sflag, size = 0x4, scoped, tag = 'scoped memory for prod_feature_encoder_forward.1']
    #allocation5 [shape = 'u8[65536]{0}', space=vmem, size = 0x10000, scoped, tag = 'input window, operand 1, single buffered']
    #allocation6 [shape = 's32[1]{0}', space=sflag, size = 0x4, scoped, tag = 'scoped memory for prod_feature_encoder_forward.1']
    #allocation7 [shape = 'u8[4096]{0}', space=vmem, size = 0x1000, scoped, tag = 'input window, operand 2, single buffered']
    %8 = vsyncpa [#allocation4], 0
    %9 = vsyncpa [#allocation6], 0
    // Predicated region
    $region2: #{prod_feature_encoder_forward.1} parent=1 // pred_check
      _
    $region3: #{prod_feature_encoder_forward.1} parent=1 // pred_check_branch
      %11 = sbr.rel (0) target = $region5
    $region4: #{prod_feature_encoder_forward.1} parent=1 // pred_region
      %s13 = ssub.s32 256, 256
      %14 = vsyncadd [#allocation4], %s13
      %s15 = sshll.u32 [#allocation3], 4
      %s16 = int_to_ptr.vmem [resolvable:$true] %s15
      %21 = dma.hbm_to_vmem [thread:$0]  %s0, 256, %s16, [#allocation4], 128, 128, 8
    $region5: #{prod_feature_encoder_forward.1} parent=1 // pred_fallthru
      _
    // Predicated region
    $region6: #{prod_feature_encoder_forward.1} parent=1 // pred_check
      _
    $region7: #{prod_feature_encoder_forward.1} parent=1 // pred_check_branch
      %23 = sbr.rel (0) target = $region9
    $region8: #{prod_feature_encoder_forward.1} parent=1 // pred_region
      %s25 = ssub.s32 2048, 2048
      %26 = vsyncadd [#allocation6], %s25
      %s27 = sshll.u32 [#allocation5], 4
      %s28 = int_to_ptr.vmem [resolvable:$true] %s27
      %33 = dma.hbm_to_vmem [thread:$0]  %s1, 2048, %s28, [#allocation6], 128, 128, 8
    $region9: #{prod_feature_encoder_forward.1} parent=1 // pred_fallthru
      _
    // Predicated region
    $region10: #{prod_feature_encoder_forward.1} parent=1 // pred_check
      _
    $region11: #{prod_feature_encoder_forward.1} parent=1 // pred_check_branch
      %35 = sbr.rel (0) target = $region13
    $region12: #{prod_feature_encoder_forward.1} parent=1 // pred_region
      %s37 = ssub.s32 128, 128
      %38 = vsyncadd [#allocation6], %s37
      %s40 = sshll.u32 [#allocation7], 4
      %s41 = int_to_ptr.vmem [resolvable:$true] %s40
      %43 = dma.hbm_to_vmem [thread:$0]  %s2, 128, %s41, [#allocation6]
    $region13: #{prod_feature_encoder_forward.1} parent=1 // pred_fallthru
      _
    // Predicated region
    $region14: #{prod_feature_encoder_forward.1} parent=1 // pred_check
      _
    $region15: #{prod_feature_encoder_forward.1} parent=1 // pred_check_branch
      %45 = sbr.rel (0) target = $region17
    $region16: #{prod_feature_encoder_forward.1} parent=1 // pred_region
      %46 = dma.done [#allocation4], 256
    $region17: #{prod_feature_encoder_forward.1} parent=1 // pred_fallthru
      _
    // Predicated region
    $region18: #{prod_feature_encoder_forward.1} parent=1 // pred_check
      _
    $region19: #{prod_feature_encoder_forward.1} parent=1 // pred_check_branch
      %48 = sbr.rel (0) target = $region21
    $region20: #{prod_feature_encoder_forward.1} parent=1 // pred_region
      %49 = dma.done [#allocation6], 2048
    $region21: #{prod_feature_encoder_forward.1} parent=1 // pred_fallthru
      _
    // Predicated region
    $region22: #{prod_feature_encoder_forward.1} parent=1 // pred_check
      _
    $region23: #{prod_feature_encoder_forward.1} parent=1 // pred_check_branch
      %51 = sbr.rel (0) target = $region25
    $region24: #{prod_feature_encoder_forward.1} parent=1 // pred_region
      %52 = dma.done [#allocation6], 128
    $region25: #{prod_feature_encoder_forward.1} parent=1 // pred_fallthru
      _
    %53 = vst [vmem:[#allocation2] sm:$0xff] 0.0
    %v54 = vld [vmem:[#allocation3] sm:$0x1]
    %vm55 = vcmask 516096
    %56 = vst.msk [vmem:[#allocation2] sm:$0x1] %vm55, %v54
    %v57 = vld [vmem:[#allocation2] sm:$0xff]
    %v58 = vld [vmem:[#allocation5] sm:$0xff]
    %v59 = vld [vmem:[#allocation5 + $0x8] sm:$0xff]
    %v60 = vld [vmem:[#allocation5 + $0x10] sm:$0xff]
    %v61 = vld [vmem:[#allocation5 + $0x18] sm:$0xff]
    %v62 = vld [vmem:[#allocation5 + $0x20] sm:$0xff]
    %v63 = vld [vmem:[#allocation5 + $0x28] sm:$0xff]
    %v64 = vld [vmem:[#allocation5 + $0x30] sm:$0xff]
    %v65 = vld [vmem:[#allocation5 + $0x38] sm:$0xff]
    %v66 = vld [vmem:[#allocation5 + $0x40] sm:$0xff]
    %v67 = vld [vmem:[#allocation5 + $0x48] sm:$0xff]
    %v68 = vld [vmem:[#allocation5 + $0x50] sm:$0xff]
    %v69 = vld [vmem:[#allocation5 + $0x58] sm:$0xff]
    %v70 = vld [vmem:[#allocation5 + $0x60] sm:$0xff]
    %v71 = vld [vmem:[#allocation5 + $0x68] sm:$0xff]
    %v72 = vld [vmem:[#allocation5 + $0x70] sm:$0xff]
    %v73 = vld [vmem:[#allocation5 + $0x78] sm:$0xff]
    %v74 = vld [vmem:[#allocation7] sm:$0xff]
    %75 = vmatprep.subr.mxu0 0.0
    %76 = vmatpush1.msra.mxu0 %v73
    %77 = vmatprep.subr.mxu0 0.0
    %78 = vmatpush1.msra.mxu0 %v72
    %79 = vmatprep.subr.mxu0 0.0
    %80 = vmatpush1.msra.mxu0 %v71
    %81 = vmatprep.subr.mxu0 0.0
    %82 = vmatpush1.msra.mxu0 %v70
    %83 = vmatprep.subr.mxu0 0.0
    %84 = vmatpush1.msra.mxu0 %v69
    %85 = vmatprep.subr.mxu0 0.0
    %86 = vmatpush1.msra.mxu0 %v68
    %87 = vmatprep.subr.mxu0 0.0
    %88 = vmatpush1.msra.mxu0 %v67
    %89 = vmatprep.subr.mxu0 0.0
    %90 = vmatpush1.msra.mxu0 %v66
    %91 = vmatprep.subr.mxu0 0.0
    %92 = vmatpush1.msra.mxu0 %v65
    %93 = vmatprep.subr.mxu0 0.0
    %94 = vmatpush1.msra.mxu0 %v64
    %95 = vmatprep.subr.mxu0 0.0
    %96 = vmatpush1.msra.mxu0 %v63
    %97 = vmatprep.subr.mxu0 0.0
    %98 = vmatpush1.msra.mxu0 %v62
    %99 = vmatprep.subr.mxu0 0.0
    %100 = vmatpush1.msra.mxu0 %v61
    %101 = vmatprep.subr.mxu0 0.0
    %102 = vmatpush1.msra.mxu0 %v60
    %103 = vmatprep.subr.mxu0 0.0
    %104 = vmatpush1.msra.mxu0 %v59
    %105 = vmatprep.subr.mxu0 0.0
    %106 = vmatpush1.msra.mxu0 %v58
    %107 = vmatprep.subr.mxu0 0.0
    %108 = vmatpush2.msra.mxu0 0.0
    %109 = vmatprep.subr.mxu0 0.0
    %110 = vmatpush2.msra.mxu0 0.0
    %111 = vmatprep.subr.mxu0 0.0
    %112 = vmatpush2.msra.mxu0 0.0
    %113 = vmatprep.subr.mxu0 0.0
    %114 = vmatpush2.msra.mxu0 0.0
    %115 = vmatprep.subr.mxu0 0.0
    %116 = vmatpush2.msra.mxu0 0.0
    %117 = vmatprep.subr.mxu0 0.0
    %118 = vmatpush2.msra.mxu0 0.0
    %119 = vmatprep.subr.mxu0 0.0
    %120 = vmatpush2.msra.mxu0 0.0
    %121 = vmatprep.subr.mxu0 0.0
    %122 = vmatpush2.msra.mxu0 0.0
    %123 = vmatprep.subr.mxu0 0.0
    %124 = vmatpush2.msra.mxu0 0.0
    %125 = vmatprep.subr.mxu0 0.0
    %126 = vmatpush2.msra.mxu0 0.0
    %127 = vmatprep.subr.mxu0 0.0
    %128 = vmatpush2.msra.mxu0 0.0
    %129 = vmatprep.subr.mxu0 0.0
    %130 = vmatpush2.msra.mxu0 0.0
    %131 = vmatprep.subr.mxu0 0.0
    %132 = vmatpush2.msra.mxu0 0.0
    %133 = vmatprep.subr.mxu0 0.0
    %134 = vmatpush2.msra.mxu0 0.0
    %135 = vmatprep.subr.mxu0 0.0
    %136 = vmatpush2.msra.mxu0 0.0
    %137 = vmatprep.subr.mxu0 0.0
    %138 = vmatpush2.msra.mxu0 0.0
    %139 = vmatprep.mubr.f32.mxu0 0.0
    %140 = vmatmul.mubr.f32.gmra.mxu0 %v57
    %v141 = vpop.f32.mrf.mxu0
    %v142 = vadd.f32 %v74, %v141
    %v143 = vpop.f32.mrf.mxu0
    %144 = vdwg.mxu0
    %145 = vst [vmem:[%s3] sm:$0xff] %v142
    // Predicated region
    $region26: #{prod_feature_encoder_forward.1} parent=1 // pred_check
      _
    $region27: #{prod_feature_encoder_forward.1} parent=1 // pred_check_branch
      %147 = sbr.rel (0) target = $region29
    $region28: #{prod_feature_encoder_forward.1} parent=1 // pred_region
      _
    $region29: #{prod_feature_encoder_forward.1} parent=1 // pred_fallthru
      _
    // Predicated region
    $region30: #{prod_feature_encoder_forward.1} parent=1 // pred_check
      _
    $region31: #{prod_feature_encoder_forward.1} parent=1 // pred_check_branch
      %149 = sbr.rel (0) target = $region33
    $region32: #{prod_feature_encoder_forward.1} parent=1 // pred_region
      _
    $region33: #{prod_feature_encoder_forward.1} parent=1 // pred_fallthru
      _
    %150 = vsyncpa [#allocation4], 1
    %151 = vsyncpa [#allocation6], 1

</llo_original>
